<compile_context>
chip_gen: v5e
topology: v5e:2x2
jax: 0.10.0
libtpu: 0.0.40
codegen_flags: <defaults>
</compile_context>

<pallas_src>
import numpy as np
import jax
import jax.numpy as jnp
from jax.experimental import pallas as pl
from jax.experimental.pallas import tpu as pltpu  # noqa: F401

# ----- model hyper-params (small, consistent with the module defaults) -----
INPUT_DIM = 8                  # per-token feature dim D
E = 2 * INPUT_DIM              # model width after cat([x, softmax(x)])
HIDDEN = 32                    # hidden_dim
NUM_HEADS = 4                  # num_perspectives (must divide E)
HEAD_DIM = E // NUM_HEADS
NUM_SEGMENTS = 8               # seq length == num_segments so cumsum fits pos table
NUM_LABELS = 3
SEQ = NUM_SEGMENTS             # L
BATCH = 2
SP = 16                        # per-batch rows (seq + special), padded to sublane mult
BSP = BATCH * SP
P_TABLE = NUM_SEGMENTS + 2     # position-embedding table rows
LN_EPS = 1e-5
BN_EPS = 1e-5

# ---- packed weight slab (bf16), no block crosses a 128-lane tile boundary ----
W_ROWS = 32
C_WQ = 0                       # (E, E)        cols   0:16
C_WKV = E                      # (E, 2E)       cols  16:48   (wk|wv)
C_WO = 3 * E                   # (E, E)        cols  48:64
C_FW1 = 4 * E                  # (E, HIDDEN)   cols  64:96
C_FW2 = C_FW1 + HIDDEN         # (HIDDEN, E)   cols  96:112
C_GEH = C_FW2 + E              # (E, H)        cols 112:116  head selector
C_MW1 = 128                    # (E, HIDDEN)   cols 128:160  (LN2-affine + BN folded)
C_MW2 = C_MW1 + HIDDEN         # (HIDDEN, NL)  cols 160:163
C_GHE = C_MW2 + 4              # (H, E)        cols 164:180  head selector^T
W_COLS = 256                   # two full 128-lane tiles

# ---- row-vector slab (f32), one parameter row per line, zero padded ----
VEC_W = 3 * E
(R_BQKV, R_BO, R_LN1G, R_LN1B, R_FB1, R_FB2, R_MB1, R_MB2, R_SPEC) = range(9)
VEC_ROWS = 16

# ---- constant selector slab (bf16, built once with numpy) ----
CA_CUM = 0                     # (BSP, BSP) per-segment lower-triangular ones
CA_BLK = BSP                   # (BSP, BSP) same-segment block of ones
CA_REAL = 2 * BSP              # (BSP, 1)  real-token rows
CA_SPEC = 2 * BSP + 1          # (BSP, 1)  special-token rows
CA_PIOTA = 2 * BSP + 2         # (BSP, P_TABLE) column iota 0..P-1
CA_COLS = 80


def _norm(x):
    mu = jnp.mean(x, axis=-1, keepdims=True)
    var = jnp.mean((x - mu) ** 2, axis=-1, keepdims=True)
    return (x - mu) * jax.lax.rsqrt(var + LN_EPS)


def _layernorm(x, g, b):
    return _norm(x) * g + b


# --------------------------- the Pallas kernel -----------------------------
def predictor_kernel(x_ref, m_ref, pos_ref, w_ref, vec_ref, ca_ref, out_ref):
    f32, bf16 = jnp.float32, jnp.bfloat16
    E_, H, Dh, HID, NL = E, NUM_HEADS, HEAD_DIM, HIDDEN, NUM_LABELS

    def dot(a, b):  # single-pass bf16 MXU matmul, f32 accumulation
        return jnp.dot(a.astype(bf16), b.astype(bf16), preferred_element_type=f32)

    x = x_ref[...]                                       # (BSP, D) f32, pre-padded rows
    m = m_ref[...]                                       # (BSP, 1) f32 in {0, 1}

    cum_m = ca_ref[:, CA_CUM:CA_CUM + BSP]               # (BSP, BSP) bf16 constants
    blk = ca_ref[:, CA_BLK:CA_BLK + BSP]                 # (BSP, BSP)
    is_real = ca_ref[:, CA_REAL:CA_REAL + 1].astype(f32)  # (BSP, 1)
    is_spec = ca_ref[:, CA_SPEC:CA_SPEC + 1].astype(f32)  # (BSP, 1)
    p_iota = ca_ref[:, CA_PIOTA:CA_PIOTA + P_TABLE].astype(f32)

    # --- masked_fill + cat([x, softmax(x)]) + special-token insert ---
    xm = x * m
    ex = jnp.exp(xm - jnp.max(xm, axis=-1, keepdims=True))
    sm = ex * pl.reciprocal(jnp.sum(ex, axis=-1, keepdims=True), approx=True)
    x2 = jnp.concatenate([xm, sm], axis=-1)              # (BSP, E)
    spec = vec_ref[R_SPEC:R_SPEC + 1, 0:E_]              # (1, E)
    base = x2 * is_real + is_spec * spec

    # --- position embedding: per-segment cumsum (lower-tri matmul, exact in
    #     bf16 for these small integers) + one-hot gather from scaled table ---
    hm = m + is_spec                                     # attention keep mask (BSP, 1)
    cums = dot(cum_m, hm)                                # (BSP, 1)
    onehot = (jnp.abs(cums - p_iota) < 0.5).astype(bf16)  # (BSP, P)
    pos = dot(onehot, pos_ref[...])                      # (BSP, E)
    h = base + pos                                       # (BSP, E) f32

    # --- projections: fused K|V, special-token Q broadcast via block matmul ---
    kv = dot(h, w_ref[0:E_, C_WKV:C_WKV + 2 * E_]) + vec_ref[R_BQKV:R_BQKV + 1, E_:3 * E_]
    k, v = kv[:, 0:E_], kv[:, E_:2 * E_]
    qsp = dot(is_spec * h, w_ref[0:E_, C_WQ:C_WQ + E_])  # nonzero only on special rows
    q_rows = dot(blk, qsp) + vec_ref[R_BQKV:R_BQKV + 1, 0:E_]   # (BSP, E) q per segment

    # --- multi-head attention, all heads at once via head-selector blocks ---
    g_eh = w_ref[0:E_, C_GEH:C_GEH + H]                  # (E, H)
    g_he = w_ref[0:H, C_GHE:C_GHE + E_]                  # (H, E)
    scores = dot(k * q_rows, g_eh) * (1.0 / Dh ** 0.5) + (1.0 - hm) * (-1e9)
    pexp = jnp.exp(scores)                               # masked / pad rows -> exactly 0
    pattn = pexp * pl.reciprocal(dot(blk, pexp), approx=True)   # per-segment softmax
    pfull = dot(pattn, g_he)                             # (BSP, E) prob per lane
    attn = dot(blk, pfull * v)                           # segment sum, broadcast to rows
    attn = dot(attn, w_ref[0:E_, C_WO:C_WO + E_]) + vec_ref[R_BO:R_BO + 1, 0:E_]

    # --- residual + LN1, FFN(relu) + residual + LN2 (LN2 affine folded) ---
    x1 = _layernorm(h + attn,
                    vec_ref[R_LN1G:R_LN1G + 1, 0:E_],
                    vec_ref[R_LN1B:R_LN1B + 1, 0:E_])
    f = jnp.maximum(dot(x1, w_ref[0:E_, C_FW1:C_FW1 + HID])
                    + vec_ref[R_FB1:R_FB1 + 1, 0:HID], 0.0)
    f = dot(f, w_ref[0:HID, C_FW2:C_FW2 + E_]) + vec_ref[R_FB2:R_FB2 + 1, 0:E_]
    y = _norm(x1 + f)

    # --- classifier MLP: Linear -> (folded eval BatchNorm) -> tanh -> Linear ---
    z = jnp.tanh(dot(y, w_ref[0:E_, C_MW1:C_MW1 + HID]) + vec_ref[R_MB1:R_MB1 + 1, 0:HID])
    out_ref[...] = dot(z, w_ref[0:HID, C_MW2:C_MW2 + NL]) + vec_ref[R_MB2:R_MB2 + 1, 0:NL]


# --------------------------- parameter / constant packing --------------------
def _head_selector():
    return ((np.arange(E)[:, None] // HEAD_DIM)
            == np.arange(NUM_HEADS)[None, :]).astype(np.float32)      # (E, H)


def _build_const_slab():
    row = np.arange(BSP)
    seg_id = row // SP
    pos_in_seg = row % SP
    same_seg = (seg_id[:, None] == seg_id[None, :])
    ca = np.zeros((BSP, CA_COLS), np.float32)
    ca[:, CA_CUM:CA_CUM + BSP] = (same_seg & (row[None, :] <= row[:, None]))
    ca[:, CA_BLK:CA_BLK + BSP] = same_seg
    ca[:, CA_REAL] = (pos_in_seg < SEQ)
    ca[:, CA_SPEC] = (pos_in_seg == SEQ)
    ca[:, CA_PIOTA:CA_PIOTA + P_TABLE] = np.arange(P_TABLE, dtype=np.float32)[None, :]
    return jnp.asarray(ca, dtype=jnp.bfloat16)


def pack_params(p):
    """One-time packing of the logical parameters into 4 kernel inputs."""
    # fold LN2 affine + eval-mode BatchNorm into the classifier's first Linear
    a = p['bn_g'] * jax.lax.rsqrt(p['bn_v'] + BN_EPS)                  # (1, H)
    mlp_w1_f = (p['ln2_g'].reshape(E, 1) * p['mlp_w1']) * a            # (E, H)
    mlp_b1_f = (p['ln2_b'] @ p['mlp_w1'] + p['mlp_b1']) * a + p['bn_b'] - p['bn_m'] * a

    # weight slab (bf16)
    w = np.zeros((W_ROWS, W_COLS), np.float32)

    def put(r, c, block):
        b = np.asarray(block, np.float32)
        w[r:r + b.shape[0], c:c + b.shape[1]] = b

    put(0, C_WQ, p['wq'])
    put(0, C_WKV, np.concatenate([np.asarray(p['wk']), np.asarray(p['wv'])], axis=1))
    put(0, C_WO, p['wo'])
    put(0, C_FW1, p['ffn_w1'])
    put(0, C_FW2, p['ffn_w2'])
    put(0, C_GEH, _head_selector())
    put(0, C_MW1, mlp_w1_f)
    put(0, C_MW2, p['mlp_w2'])
    put(0, C_GHE, _head_selector().T)
    w_slab = jnp.asarray(w, dtype=jnp.bfloat16)

    # row-vector slab (f32)
    def row(v):
        v = np.asarray(v, np.float32).reshape(1, -1)
        return np.pad(v, ((0, 0), (0, VEC_W - v.shape[1])))

    rows = [
        row(np.concatenate([np.asarray(p['bq']), np.asarray(p['bk']),
                            np.asarray(p['bv'])], axis=1)),            # R_BQKV
        row(p['bo']), row(p['ln1_g']), row(p['ln1_b']),
        row(p['ffn_b1']), row(p['ffn_b2']),
        row(mlp_b1_f), row(p['mlp_b2']),
        row(np.asarray(p['special_vec']).reshape(1, -1)),
    ]
    vec = np.concatenate(rows + [np.zeros((VEC_ROWS - len(rows), VEC_W), np.float32)],
                         axis=0)
    vec = jnp.asarray(vec, dtype=jnp.float32)

    pos_table = jnp.asarray(p['pos_table'] * p['pos_scale'], dtype=jnp.bfloat16)

    return {'w_slab': w_slab, 'vec': vec, 'pos_table': pos_table,
            'const_a': _build_const_slab()}


# ------------------------------- wrapper ------------------------------------
@jax.jit
def transformer_predictor(x, mask, packed):
    B, L, D = x.shape
    assert (B, L, D) == (BATCH, SEQ, INPUT_DIM)
    # cheap wrapper glue only: pad + flatten to 2-D slabs
    xf = jnp.pad(x.astype(jnp.float32), ((0, 0), (0, SP - L), (0, 0))).reshape(B * SP, D)
    mf = jnp.pad(mask.astype(jnp.float32), ((0, 0), (0, SP - L))).reshape(B * SP, 1)
    out_rows = pl.pallas_call(
        predictor_kernel,
        out_shape=jax.ShapeDtypeStruct((BSP, NUM_LABELS), jnp.float32),
    )(xf, mf, packed['pos_table'], packed['w_slab'], packed['vec'], packed['const_a'])
    # only the special-token row of each segment carries the prediction
    return out_rows.reshape(B, SP, NUM_LABELS)[:, SEQ, :]


# -------------------------- deterministic params -----------------------------
def init_params(key):
    D, E_, H = INPUT_DIM, E, HIDDEN
    ks = iter(jax.random.split(key, 40))

    def nrm(shape, std=1.0, mean=0.0):
        return (jax.random.normal(next(ks), shape) * std + mean).astype(jnp.float32)

    def lin(fan_in, fan_out):
        return nrm((fan_in, fan_out), 1.0 / fan_in ** 0.5)

    p = {}
    p['special_vec'] = jnp.concatenate(
        [nrm((1, 1, D), 1.0 / D ** 0.5),          # N(0, 1/sqrt(D))
         nrm((1, 1, D), 1.0, 1.0 / D)], axis=-1)  # N(1/D, 1)
    p['pos_table'] = nrm((NUM_SEGMENTS + 2, E_), 1.0)
    p['pos_scale'] = jnp.float32(1.0 / D ** 0.5)

    for name in ('wq', 'wk', 'wv', 'wo'):
        p[name] = lin(E_, E_)
    for name in ('bq', 'bk', 'bv', 'bo'):
        p[name] = nrm((1, E_), 0.02)
    p['ln1_g'] = 1.0 + nrm((1, E_), 0.05)
    p['ln1_b'] = nrm((1, E_), 0.05)
    p['ffn_w1'] = lin(E_, H)
    p['ffn_b1'] = nrm((1, H), 0.02)
    p['ffn_w2'] = lin(H, E_)
    p['ffn_b2'] = nrm((1, E_), 0.02)
    p['ln2_g'] = 1.0 + nrm((1, E_), 0.05)
    p['ln2_b'] = nrm((1, E_), 0.05)
    p['mlp_w1'] = lin(E_, H)
    p['mlp_b1'] = nrm((1, H), 0.02)
    p['bn_g'] = 1.0 + nrm((1, H), 0.05)
    p['bn_b'] = nrm((1, H), 0.05)
    p['bn_m'] = nrm((1, H), 0.1)
    p['bn_v'] = 1.0 + jnp.abs(nrm((1, H), 0.1))
    p['mlp_w2'] = lin(H, NUM_LABELS)
    p['mlp_b2'] = nrm((1, NUM_LABELS), 0.02)
    return p


# ------------------------- pure-JAX reference check --------------------------
def reference_forward(x, mask, params):
    B, L, D = x.shape
    E_ = 2 * D
    keep = mask.astype(jnp.float32)
    xm = jnp.where(mask[:, :, None], x, 0.0)
    x2 = jnp.concatenate([xm, jax.nn.softmax(xm, axis=-1)], axis=-1)
    special = jnp.broadcast_to(params['special_vec'], (B, 1, E_))
    h = jnp.concatenate([x2, special], axis=1)
    h_mask = jnp.concatenate([keep, jnp.ones((B, 1), jnp.float32)], axis=1)
    cumsum = jnp.cumsum(h_mask.astype(jnp.int32), axis=1)
    h = h + params['pos_table'][cumsum] * params['pos_scale']

    q_in = h[:, -1:, :]
    q = q_in @ params['wq'] + params['bq']
    k = h @ params['wk'] + params['bk']
    v = h @ params['wv'] + params['bv']

    def split(t):
        return t.reshape(B, -1, NUM_HEADS, HEAD_DIM).transpose(0, 2, 1, 3)

    qh, kh, vh = split(q), split(k), split(v)
    s = jnp.einsum('bhqd,bhkd->bhqk', qh, kh) / (HEAD_DIM ** 0.5)
    s = s + ((1.0 - h_mask) * -1e9)[:, None, None, :]
    p = jax.nn.softmax(s, axis=-1)
    a = jnp.einsum('bhqk,bhkd->bhqd', p, vh).transpose(0, 2, 1, 3).reshape(B, 1, E_)
    a = a @ params['wo'] + params['bo']

    def ln(t, g, b):
        mu = t.mean(-1, keepdims=True)
        var = ((t - mu) ** 2).mean(-1, keepdims=True)
        return (t - mu) / jnp.sqrt(var + LN_EPS) * g + b

    xh = ln(q_in + a, params['ln1_g'], params['ln1_b'])
    f = jnp.maximum(xh @ params['ffn_w1'] + params['ffn_b1'], 0.0)
    f = f @ params['ffn_w2'] + params['ffn_b2']
    y = ln(xh + f, params['ln2_g'], params['ln2_b']).reshape(B, E_)
    z = y @ params['mlp_w1'] + params['mlp_b1']
    z = (z - params['bn_m']) / jnp.sqrt(params['bn_v'] + BN_EPS) * params['bn_g'] + params['bn_b']
    z = jnp.tanh(z)
    return z @ params['mlp_w2'] + params['mlp_b2']


if __name__ == "__main__":
    key = jax.random.PRNGKey(0)
    kp, kx, km = jax.random.split(key, 3)

    params = init_params(kp)
    packed = pack_params(params)                     # one-time parameter packing
    x = jax.random.normal(kx, (BATCH, SEQ, INPUT_DIM), dtype=jnp.float32)
    mask = jax.random.bernoulli(km, 0.75, (BATCH, SEQ))   # bool mask, like PyTorch

    out = jax.block_until_ready(transformer_predictor(x, mask, packed))
    with jax.default_matmul_precision("float32"):    # f32 gold reference
        ref = jax.block_until_ready(reference_forward(x, mask, params))

    assert out.shape == (BATCH, NUM_LABELS), out.shape
    assert bool(jnp.all(jnp.isfinite(out)))
    # kernel uses single-pass bf16 MXU dots + approx reciprocals -> allow ~1e-2 slack
    assert bool(jnp.allclose(out, ref, atol=2e-2, rtol=2e-2)), (out, ref)
    print("KERNEL_OK")
</pallas_src>

<mosaic_0001>
module attributes {stable_mosaic.version = 11 : i64} {
  func.func @predictor_kernel(%arg0: memref<32x8xf32, #tpu.memory_space<vmem>>, %arg1: memref<32x1xf32, #tpu.memory_space<vmem>>, %arg2: memref<10x16xbf16, #tpu.memory_space<vmem>>, %arg3: memref<32x256xbf16, #tpu.memory_space<vmem>>, %arg4: memref<16x48xf32, #tpu.memory_space<vmem>>, %arg5: memref<32x80xbf16, #tpu.memory_space<vmem>>, %arg6: memref<32x3xf32, #tpu.memory_space<vmem>>) attributes {dimension_semantics = [], scalar_prefetch = 0 : i64, scratch_operands = 0 : i64, tpu.core_type = #tpu.core_type<tc>} {
    %c0 = arith.constant 0 : index
    %c0_0 = arith.constant 0 : index
    %0 = vector.load %arg0[%c0, %c0_0] : memref<32x8xf32, #tpu.memory_space<vmem>>, vector<32x8xf32>
    %c0_1 = arith.constant 0 : index
    %c0_2 = arith.constant 0 : index
    %1 = vector.load %arg1[%c0_1, %c0_2] : memref<32x1xf32, #tpu.memory_space<vmem>>, vector<32x1xf32>
    %c0_3 = arith.constant 0 : index
    %c0_4 = arith.constant 0 : index
    %2 = vector.load %arg5[%c0_3, %c0_4] : memref<32x80xbf16, #tpu.memory_space<vmem>>, vector<32x32xbf16>
    %c0_5 = arith.constant 0 : index
    %c32 = arith.constant 32 : index
    %3 = vector.load %arg5[%c0_5, %c32] : memref<32x80xbf16, #tpu.memory_space<vmem>>, vector<32x32xbf16>
    %c0_6 = arith.constant 0 : index
    %c64 = arith.constant 64 : index
    %4 = vector.load %arg5[%c0_6, %c64] : memref<32x80xbf16, #tpu.memory_space<vmem>>, vector<32x1xbf16>
    %5 = arith.extf %4 : vector<32x1xbf16> to vector<32x1xf32>
    %c0_7 = arith.constant 0 : index
    %c65 = arith.constant 65 : index
    %6 = vector.load %arg5[%c0_7, %c65] : memref<32x80xbf16, #tpu.memory_space<vmem>>, vector<32x1xbf16>
    %7 = arith.extf %6 : vector<32x1xbf16> to vector<32x1xf32>
    %c0_8 = arith.constant 0 : index
    %c66 = arith.constant 66 : index
    %8 = vector.load %arg5[%c0_8, %c66] : memref<32x80xbf16, #tpu.memory_space<vmem>>, vector<32x10xbf16>
    %9 = arith.extf %8 : vector<32x10xbf16> to vector<32x10xf32>
    %10 = vector.broadcast %1 : vector<32x1xf32> to vector<32x8xf32>
    %11 = arith.mulf %0, %10 : vector<32x8xf32>
    %cst = arith.constant dense<0xFF800000> : vector<32xf32>
    %12 = vector.multi_reduction <maximumf>, %11, %cst [1] : vector<32x8xf32> to vector<32xf32>
    %13 = vector.shape_cast %12 : vector<32xf32> to vector<32x1xf32>
    %14 = vector.broadcast %13 : vector<32x1xf32> to vector<32x8xf32>
    %15 = arith.subf %11, %14 : vector<32x8xf32>
    %16 = math.exp %15 : vector<32x8xf32>
    %cst_9 = arith.constant dense<0.000000e+00> : vector<32xf32>
    %17 = vector.multi_reduction <add>, %16, %cst_9 [1] : vector<32x8xf32> to vector<32xf32>
    %18 = vector.shape_cast %17 : vector<32xf32> to vector<32x1xf32>
    %19 = tpu.reciprocal %18 {approx = true} : vector<32x1xf32> -> vector<32x1xf32>
    %20 = vector.broadcast %19 : vector<32x1xf32> to vector<32x8xf32>
    %21 = arith.mulf %16, %20 : vector<32x8xf32>
    %22 = tpu.concatenate %11, %21 in 1 : vector<32x8xf32>, vector<32x8xf32> -> vector<32x16xf32>
    %c8 = arith.constant 8 : index
    %c0_10 = arith.constant 0 : index
    %23 = vector.load %arg4[%c8, %c0_10] : memref<16x48xf32, #tpu.memory_space<vmem>>, vector<1x16xf32>
    %24 = vector.broadcast %5 : vector<32x1xf32> to vector<32x16xf32>
    %25 = arith.mulf %22, %24 : vector<32x16xf32>
    %26 = vector.broadcast %7 : vector<32x1xf32> to vector<32x16xf32>
    %27 = vector.broadcast %23 : vector<1x16xf32> to vector<32x16xf32>
    %28 = arith.mulf %26, %27 : vector<32x16xf32>
    %29 = arith.addf %25, %28 : vector<32x16xf32>
    %30 = arith.addf %1, %7 : vector<32x1xf32>
    %31 = arith.truncf %30 : vector<32x1xf32> to vector<32x1xbf16>
    %cst_11 = arith.constant dense<0.000000e+00> : vector<32x1xf32>
    %32 = tpu.matmul %2, %31, %cst_11 {dimension_numbers = #tpu.dot_dimension_numbers<[1], [0], [0], [1], [0, 0, 1, 1], [], []>} : vector<32x32xbf16>, vector<32x1xbf16>, vector<32x1xf32> -> vector<32x1xf32>
    %33 = vector.broadcast %32 : vector<32x1xf32> to vector<32x10xf32>
    %34 = arith.subf %33, %9 : vector<32x10xf32>
    %35 = math.absf %34 : vector<32x10xf32>
    %cst_12 = arith.constant 5.000000e-01 : f32
    %36 = vector.broadcast %cst_12 : f32 to vector<32x10xf32>
    %37 = arith.cmpf olt, %35, %36 : vector<32x10xf32>
    %38 = arith.extui %37 : vector<32x10xi1> to vector<32x10xi32>
    %39 = arith.sitofp %38 : vector<32x10xi32> to vector<32x10xf32>
    %40 = arith.truncf %39 : vector<32x10xf32> to vector<32x10xbf16>
    %c0_13 = arith.constant 0 : index
    %c0_14 = arith.constant 0 : index
    %41 = vector.load %arg2[%c0_13, %c0_14] : memref<10x16xbf16, #tpu.memory_space<vmem>>, vector<10x16xbf16>
    %cst_15 = arith.constant dense<0.000000e+00> : vector<32x16xf32>
    %42 = tpu.matmul %40, %41, %cst_15 {dimension_numbers = #tpu.dot_dimension_numbers<[1], [0], [0], [1], [0, 0, 1, 1], [], []>} : vector<32x10xbf16>, vector<10x16xbf16>, vector<32x16xf32> -> vector<32x16xf32>
    %43 = arith.addf %29, %42 : vector<32x16xf32>
    %c0_16 = arith.constant 0 : index
    %c16 = arith.constant 16 : index
    %44 = vector.load %arg3[%c0_16, %c16] : memref<32x256xbf16, #tpu.memory_space<vmem>>, vector<16x32xbf16>
    %45 = arith.truncf %43 : vector<32x16xf32> to vector<32x16xbf16>
    %cst_17 = arith.constant dense<0.000000e+00> : vector<32x32xf32>
    %46 = tpu.matmul %45, %44, %cst_17 {dimension_numbers = #tpu.dot_dimension_numbers<[1], [0], [0], [1], [0, 0, 1, 1], [], []>} : vector<32x16xbf16>, vector<16x32xbf16>, vector<32x32xf32> -> vector<32x32xf32>
    %c0_18 = arith.constant 0 : index
    %c16_19 = arith.constant 16 : index
    %47 = vector.load %arg4[%c0_18, %c16_19] : memref<16x48xf32, #tpu.memory_space<vmem>>, vector<1x32xf32>
    %48 = vector.broadcast %47 : vector<1x32xf32> to vector<32x32xf32>
    %49 = arith.addf %46, %48 : vector<32x32xf32>
    %50 = vector.extract_strided_slice %49 {offsets = [0, 0], sizes = [32, 16], strides = [1, 1]} : vector<32x32xf32> to vector<32x16xf32>
    %51 = vector.extract_strided_slice %49 {offsets = [0, 16], sizes = [32, 16], strides = [1, 1]} : vector<32x32xf32> to vector<32x16xf32>
    %52 = vector.broadcast %7 : vector<32x1xf32> to vector<32x16xf32>
    %53 = arith.mulf %52, %43 : vector<32x16xf32>
    %c0_20 = arith.constant 0 : index
    %c0_21 = arith.constant 0 : index
    %54 = vector.load %arg3[%c0_20, %c0_21] : memref<32x256xbf16, #tpu.memory_space<vmem>>, vector<16x16xbf16>
    %55 = arith.truncf %53 : vector<32x16xf32> to vector<32x16xbf16>
    %cst_22 = arith.constant dense<0.000000e+00> : vector<32x16xf32>
    %56 = tpu.matmul %55, %54, %cst_22 {dimension_numbers = #tpu.dot_dimension_numbers<[1], [0], [0], [1], [0, 0, 1, 1], [], []>} : vector<32x16xbf16>, vector<16x16xbf16>, vector<32x16xf32> -> vector<32x16xf32>
    %57 = arith.truncf %56 : vector<32x16xf32> to vector<32x16xbf16>
    %cst_23 = arith.constant dense<0.000000e+00> : vector<32x16xf32>
    %58 = tpu.matmul %3, %57, %cst_23 {dimension_numbers = #tpu.dot_dimension_numbers<[1], [0], [0], [1], [0, 0, 1, 1], [], []>} : vector<32x32xbf16>, vector<32x16xbf16>, vector<32x16xf32> -> vector<32x16xf32>
    %c0_24 = arith.constant 0 : index
    %c0_25 = arith.constant 0 : index
    %59 = vector.load %arg4[%c0_24, %c0_25] : memref<16x48xf32, #tpu.memory_space<vmem>>, vector<1x16xf32>
    %60 = vector.broadcast %59 : vector<1x16xf32> to vector<32x16xf32>
    %61 = arith.addf %58, %60 : vector<32x16xf32>
    %c0_26 = arith.constant 0 : index
    %c112 = arith.constant 112 : index
    %62 = vector.load %arg3[%c0_26, %c112] : memref<32x256xbf16, #tpu.memory_space<vmem>>, vector<16x4xbf16>
    %c0_27 = arith.constant 0 : index
    %c164 = arith.constant 164 : index
    %63 = vector.load %arg3[%c0_27, %c164] : memref<32x256xbf16, #tpu.memory_space<vmem>>, vector<4x16xbf16>
    %64 = arith.mulf %50, %61 : vector<32x16xf32>
    %65 = arith.truncf %64 : vector<32x16xf32> to vector<32x16xbf16>
    %cst_28 = arith.constant dense<0.000000e+00> : vector<32x4xf32>
    %66 = tpu.matmul %65, %62, %cst_28 {dimension_numbers = #tpu.dot_dimension_numbers<[1], [0], [0], [1], [0, 0, 1, 1], [], []>} : vector<32x16xbf16>, vector<16x4xbf16>, vector<32x4xf32> -> vector<32x4xf32>
    %cst_29 = arith.constant 5.000000e-01 : f32
    %67 = vector.broadcast %cst_29 : f32 to vector<32x4xf32>
    %68 = arith.mulf %66, %67 : vector<32x4xf32>
    %cst_30 = arith.constant 1.000000e+00 : f32
    %69 = vector.broadcast %cst_30 : f32 to vector<32x1xf32>
    %70 = arith.subf %69, %30 : vector<32x1xf32>
    %cst_31 = arith.constant -1.000000e+09 : f32
    %71 = vector.broadcast %cst_31 : f32 to vector<32x1xf32>
    %72 = arith.mulf %70, %71 : vector<32x1xf32>
    %73 = vector.broadcast %72 : vector<32x1xf32> to vector<32x4xf32>
    %74 = arith.addf %68, %73 : vector<32x4xf32>
    %75 = math.exp %74 : vector<32x4xf32>
    %76 = arith.truncf %75 : vector<32x4xf32> to vector<32x4xbf16>
    %cst_32 = arith.constant dense<0.000000e+00> : vector<32x4xf32>
    %77 = tpu.matmul %3, %76, %cst_32 {dimension_numbers = #tpu.dot_dimension_numbers<[1], [0], [0], [1], [0, 0, 1, 1], [], []>} : vector<32x32xbf16>, vector<32x4xbf16>, vector<32x4xf32> -> vector<32x4xf32>
    %78 = tpu.reciprocal %77 {approx = true} : vector<32x4xf32> -> vector<32x4xf32>
    %79 = arith.mulf %75, %78 : vector<32x4xf32>
    %80 = arith.truncf %79 : vector<32x4xf32> to vector<32x4xbf16>
    %cst_33 = arith.constant dense<0.000000e+00> : vector<32x16xf32>
    %81 = tpu.matmul %80, %63, %cst_33 {dimension_numbers = #tpu.dot_dimension_numbers<[1], [0], [0], [1], [0, 0, 1, 1], [], []>} : vector<32x4xbf16>, vector<4x16xbf16>, vector<32x16xf32> -> vector<32x16xf32>
    %82 = arith.mulf %81, %51 : vector<32x16xf32>
    %83 = arith.truncf %82 : vector<32x16xf32> to vector<32x16xbf16>
    %cst_34 = arith.constant dense<0.000000e+00> : vector<32x16xf32>
    %84 = tpu.matmul %3, %83, %cst_34 {dimension_numbers = #tpu.dot_dimension_numbers<[1], [0], [0], [1], [0, 0, 1, 1], [], []>} : vector<32x32xbf16>, vector<32x16xbf16>, vector<32x16xf32> -> vector<32x16xf32>
    %c0_35 = arith.constant 0 : index
    %c48 = arith.constant 48 : index
    %85 = vector.load %arg3[%c0_35, %c48] : memref<32x256xbf16, #tpu.memory_space<vmem>>, vector<16x16xbf16>
    %86 = arith.truncf %84 : vector<32x16xf32> to vector<32x16xbf16>
    %cst_36 = arith.constant dense<0.000000e+00> : vector<32x16xf32>
    %87 = tpu.matmul %86, %85, %cst_36 {dimension_numbers = #tpu.dot_dimension_numbers<[1], [0], [0], [1], [0, 0, 1, 1], [], []>} : vector<32x16xbf16>, vector<16x16xbf16>, vector<32x16xf32> -> vector<32x16xf32>
    %c1 = arith.constant 1 : index
    %c0_37 = arith.constant 0 : index
    %88 = vector.load %arg4[%c1, %c0_37] : memref<16x48xf32, #tpu.memory_space<vmem>>, vector<1x16xf32>
    %89 = vector.broadcast %88 : vector<1x16xf32> to vector<32x16xf32>
    %90 = arith.addf %87, %89 : vector<32x16xf32>
    %91 = arith.addf %43, %90 : vector<32x16xf32>
    %c2 = arith.constant 2 : index
    %c0_38 = arith.constant 0 : index
    %92 = vector.load %arg4[%c2, %c0_38] : memref<16x48xf32, #tpu.memory_space<vmem>>, vector<1x16xf32>
    %c3 = arith.constant 3 : index
    %c0_39 = arith.constant 0 : index
    %93 = vector.load %arg4[%c3, %c0_39] : memref<16x48xf32, #tpu.memory_space<vmem>>, vector<1x16xf32>
    %cst_40 = arith.constant dense<0.000000e+00> : vector<32xf32>
    %94 = vector.multi_reduction <add>, %91, %cst_40 [1] : vector<32x16xf32> to vector<32xf32>
    %95 = vector.shape_cast %94 : vector<32xf32> to vector<32x1xf32>
    %cst_41 = arith.constant 1.600000e+01 : f32
    %96 = vector.broadcast %cst_41 : f32 to vector<32x1xf32>
    %97 = arith.divf %95, %96 : vector<32x1xf32>
    %98 = vector.broadcast %97 : vector<32x1xf32> to vector<32x16xf32>
    %99 = arith.subf %91, %98 : vector<32x16xf32>
    %100 = arith.mulf %99, %99 : vector<32x16xf32>
    %cst_42 = arith.constant dense<0.000000e+00> : vector<32xf32>
    %101 = vector.multi_reduction <add>, %100, %cst_42 [1] : vector<32x16xf32> to vector<32xf32>
    %102 = vector.shape_cast %101 : vector<32xf32> to vector<32x1xf32>
    %cst_43 = arith.constant 1.600000e+01 : f32
    %103 = vector.broadcast %cst_43 : f32 to vector<32x1xf32>
    %104 = arith.divf %102, %103 : vector<32x1xf32>
    %105 = vector.broadcast %97 : vector<32x1xf32> to vector<32x16xf32>
    %106 = arith.subf %91, %105 : vector<32x16xf32>
    %cst_44 = arith.constant 9.99999974E-6 : f32
    %107 = vector.broadcast %cst_44 : f32 to vector<32x1xf32>
    %108 = arith.addf %104, %107 : vector<32x1xf32>
    %109 = math.rsqrt %108 : vector<32x1xf32>
    %110 = vector.broadcast %109 : vector<32x1xf32> to vector<32x16xf32>
    %111 = arith.mulf %106, %110 : vector<32x16xf32>
    %112 = vector.broadcast %92 : vector<1x16xf32> to vector<32x16xf32>
    %113 = arith.mulf %111, %112 : vector<32x16xf32>
    %114 = vector.broadcast %93 : vector<1x16xf32> to vector<32x16xf32>
    %115 = arith.addf %113, %114 : vector<32x16xf32>
    %c0_45 = arith.constant 0 : index
    %c64_46 = arith.constant 64 : index
    %116 = vector.load %arg3[%c0_45, %c64_46] : memref<32x256xbf16, #tpu.memory_space<vmem>>, vector<16x32xbf16>
    %117 = arith.truncf %115 : vector<32x16xf32> to vector<32x16xbf16>
    %cst_47 = arith.constant dense<0.000000e+00> : vector<32x32xf32>
    %118 = tpu.matmul %117, %116, %cst_47 {dimension_numbers = #tpu.dot_dimension_numbers<[1], [0], [0], [1], [0, 0, 1, 1], [], []>} : vector<32x16xbf16>, vector<16x32xbf16>, vector<32x32xf32> -> vector<32x32xf32>
    %c4 = arith.constant 4 : index
    %c0_48 = arith.constant 0 : index
    %119 = vector.load %arg4[%c4, %c0_48] : memref<16x48xf32, #tpu.memory_space<vmem>>, vector<1x32xf32>
    %120 = vector.broadcast %119 : vector<1x32xf32> to vector<32x32xf32>
    %121 = arith.addf %118, %120 : vector<32x32xf32>
    %cst_49 = arith.constant 0.000000e+00 : f32
    %122 = vector.broadcast %cst_49 : f32 to vector<32x32xf32>
    %123 = arith.maximumf %121, %122 : vector<32x32xf32>
    %c0_50 = arith.constant 0 : index
    %c96 = arith.constant 96 : index
    %124 = vector.load %arg3[%c0_50, %c96] : memref<32x256xbf16, #tpu.memory_space<vmem>>, vector<32x16xbf16>
    %125 = arith.truncf %123 : vector<32x32xf32> to vector<32x32xbf16>
    %cst_51 = arith.constant dense<0.000000e+00> : vector<32x16xf32>
    %126 = tpu.matmul %125, %124, %cst_51 {dimension_numbers = #tpu.dot_dimension_numbers<[1], [0], [0], [1], [0, 0, 1, 1], [], []>} : vector<32x32xbf16>, vector<32x16xbf16>, vector<32x16xf32> -> vector<32x16xf32>
    %c5 = arith.constant 5 : index
    %c0_52 = arith.constant 0 : index
    %127 = vector.load %arg4[%c5, %c0_52] : memref<16x48xf32, #tpu.memory_space<vmem>>, vector<1x16xf32>
    %128 = vector.broadcast %127 : vector<1x16xf32> to vector<32x16xf32>
    %129 = arith.addf %126, %128 : vector<32x16xf32>
    %130 = arith.addf %115, %129 : vector<32x16xf32>
    %cst_53 = arith.constant dense<0.000000e+00> : vector<32xf32>
    %131 = vector.multi_reduction <add>, %130, %cst_53 [1] : vector<32x16xf32> to vector<32xf32>
    %132 = vector.shape_cast %131 : vector<32xf32> to vector<32x1xf32>
    %cst_54 = arith.constant 1.600000e+01 : f32
    %133 = vector.broadcast %cst_54 : f32 to vector<32x1xf32>
    %134 = arith.divf %132, %133 : vector<32x1xf32>
    %135 = vector.broadcast %134 : vector<32x1xf32> to vector<32x16xf32>
    %136 = arith.subf %130, %135 : vector<32x16xf32>
    %137 = arith.mulf %136, %136 : vector<32x16xf32>
    %cst_55 = arith.constant dense<0.000000e+00> : vector<32xf32>
    %138 = vector.multi_reduction <add>, %137, %cst_55 [1] : vector<32x16xf32> to vector<32xf32>
    %139 = vector.shape_cast %138 : vector<32xf32> to vector<32x1xf32>
    %cst_56 = arith.constant 1.600000e+01 : f32
    %140 = vector.broadcast %cst_56 : f32 to vector<32x1xf32>
    %141 = arith.divf %139, %140 : vector<32x1xf32>
    %142 = vector.broadcast %134 : vector<32x1xf32> to vector<32x16xf32>
    %143 = arith.subf %130, %142 : vector<32x16xf32>
    %cst_57 = arith.constant 9.99999974E-6 : f32
    %144 = vector.broadcast %cst_57 : f32 to vector<32x1xf32>
    %145 = arith.addf %141, %144 : vector<32x1xf32>
    %146 = math.rsqrt %145 : vector<32x1xf32>
    %147 = vector.broadcast %146 : vector<32x1xf32> to vector<32x16xf32>
    %148 = arith.mulf %143, %147 : vector<32x16xf32>
    %c0_58 = arith.constant 0 : index
    %c128 = arith.constant 128 : index
    %149 = vector.load %arg3[%c0_58, %c128] : memref<32x256xbf16, #tpu.memory_space<vmem>>, vector<16x32xbf16>
    %150 = arith.truncf %148 : vector<32x16xf32> to vector<32x16xbf16>
    %cst_59 = arith.constant dense<0.000000e+00> : vector<32x32xf32>
    %151 = tpu.matmul %150, %149, %cst_59 {dimension_numbers = #tpu.dot_dimension_numbers<[1], [0], [0], [1], [0, 0, 1, 1], [], []>} : vector<32x16xbf16>, vector<16x32xbf16>, vector<32x32xf32> -> vector<32x32xf32>
    %c6 = arith.constant 6 : index
    %c0_60 = arith.constant 0 : index
    %152 = vector.load %arg4[%c6, %c0_60] : memref<16x48xf32, #tpu.memory_space<vmem>>, vector<1x32xf32>
    %153 = vector.broadcast %152 : vector<1x32xf32> to vector<32x32xf32>
    %154 = arith.addf %151, %153 : vector<32x32xf32>
    %155 = math.tanh %154 : vector<32x32xf32>
    %c0_61 = arith.constant 0 : index
    %c160 = arith.constant 160 : index
    %156 = vector.load %arg3[%c0_61, %c160] : memref<32x256xbf16, #tpu.memory_space<vmem>>, vector<32x3xbf16>
    %157 = arith.truncf %155 : vector<32x32xf32> to vector<32x32xbf16>
    %cst_62 = arith.constant dense<0.000000e+00> : vector<32x3xf32>
    %158 = tpu.matmul %157, %156, %cst_62 {dimension_numbers = #tpu.dot_dimension_numbers<[1], [0], [0], [1], [0, 0, 1, 1], [], []>} : vector<32x32xbf16>, vector<32x3xbf16>, vector<32x3xf32> -> vector<32x3xf32>
    %c7 = arith.constant 7 : index
    %c0_63 = arith.constant 0 : index
    %159 = vector.load %arg4[%c7, %c0_63] : memref<16x48xf32, #tpu.memory_space<vmem>>, vector<1x3xf32>
    %160 = vector.broadcast %159 : vector<1x3xf32> to vector<32x3xf32>
    %161 = arith.addf %158, %160 : vector<32x3xf32>
    %c0_64 = arith.constant 0 : index
    %c0_65 = arith.constant 0 : index
    %162 = vector.load %arg6[%c0_64, %c0_65] : memref<32x3xf32, #tpu.memory_space<vmem>>, vector<32x3xf32>
    tpu.vector_store %arg6[%c0_64, %c0_65], %161 {strides = array<i32>} : memref<32x3xf32, #tpu.memory_space<vmem>>, vector<32x3xf32>,
    return
  }
}

</mosaic_0001>

<llo_original>
// kernel: transformer_predictor.1
$region0: #{transformer_predictor.1}
  #allocation0 [shape = 'u32[]', space=smem, size = 0x4, offset = 0x4, fixed_abs, tag = 'smem constant byte address 0x4 - core index']
  #allocation1 [shape = 'u32[72,128]{1,0:T(1,128)}', space=vmem, size = 0x9000, scoped, tag = 'internal scratch']
  %s0 = inlined_call_operand.vmem [shape: f32[32,8], index: 0, kind: input, shape index: {}]
  %s1 = inlined_call_operand.vmem [shape: f32[32,1], index: 1, kind: input, shape index: {}]
  %s2 = inlined_call_operand.vmem [shape: bf16[10,16], index: 2, kind: input, shape index: {}]
  %s3 = inlined_call_operand.vmem [shape: bf16[32,256], index: 3, kind: input, shape index: {}]
  %s4 = inlined_call_operand.vmem [shape: f32[16,48], index: 4, kind: input, shape index: {}]
  %s5 = inlined_call_operand.vmem [shape: bf16[32,80], index: 5, kind: input, shape index: {}]
  %s6 = inlined_call_operand.vmem [shape: f32[32,3], index: 6, kind: output, shape index: {}]
  %s7 = sld [smem:[#allocation0]]
  $region34: #{transformer_predictor.1} parent=0
    _
  %s9 = ssub.s32 1, %s7
  %s10 = scalar_select 0, %s9, %s7
  // Predicated region
  $region2: #{transformer_predictor.1} parent=0 // pred_check
    _
  $region3: #{transformer_predictor.1} parent=0 // pred_check_branch
    %12 = sbr.rel (0) target = $region5
  $region4: #{transformer_predictor.1} parent=0 // pred_region
    _
  $region5: #{transformer_predictor.1} parent=0 // pred_fallthru
    _
  // Predicated region
  $region6: #{transformer_predictor.1} parent=0 // pred_check
    _
  $region7: #{transformer_predictor.1} parent=0 // pred_check_branch
    %14 = sbr.rel (0) target = $region9
  $region8: #{transformer_predictor.1} parent=0 // pred_region
    _
  $region9: #{transformer_predictor.1} parent=0 // pred_fallthru
    _
  // Predicated region
  $region10: #{transformer_predictor.1} parent=0 // pred_check
    _
  $region11: #{transformer_predictor.1} parent=0 // pred_check_branch
    %16 = sbr.rel (0) target = $region13
  $region12: #{transformer_predictor.1} parent=0 // pred_region
    _
  $region13: #{transformer_predictor.1} parent=0 // pred_fallthru
    _
  // Predicated region
  $region14: #{transformer_predictor.1} parent=0 // pred_check
    _
  $region15: #{transformer_predictor.1} parent=0 // pred_check_branch
    %18 = sbr.rel (0) target = $region17
  $region16: #{transformer_predictor.1} parent=0 // pred_region
    _
  $region17: #{transformer_predictor.1} parent=0 // pred_fallthru
    _
  // Predicated region
  $region18: #{transformer_predictor.1} parent=0 // pred_check
    _
  $region19: #{transformer_predictor.1} parent=0 // pred_check_branch
    %20 = sbr.rel (0) target = $region21
  $region20: #{transformer_predictor.1} parent=0 // pred_region
    _
  $region21: #{transformer_predictor.1} parent=0 // pred_fallthru
    _
  // Predicated region
  $region22: #{transformer_predictor.1} parent=0 // pred_check
    _
  $region23: #{transformer_predictor.1} parent=0 // pred_check_branch
    %22 = sbr.rel (0) target = $region25
  $region24: #{transformer_predictor.1} parent=0 // pred_region
    _
  $region25: #{transformer_predictor.1} parent=0 // pred_fallthru
    _
  %v24 = vld [vmem:[%s0] sm:$0xff]
  %v25 = vld [vmem:[%s0 + $0x8] sm:$0xff]
  %v26 = vld [vmem:[%s0 + $0x10] sm:$0xff]
  %v27 = vld [vmem:[%s0 + $0x18] sm:$0xff]
  %v28 = vld [vmem:[%s1] sm:$0xff]
  %v29 = vld [vmem:[%s1 + $0x8] sm:$0xff]
  %v30 = vld [vmem:[%s1 + $0x10] sm:$0xff]
  %v31 = vld [vmem:[%s1 + $0x18] sm:$0xff]
  %v32 = vld [vmem:[%s5] sm:$0xf]
  %v33 = vld [vmem:[%s5 + $0x4] sm:$0xf]
  %v34 = vld [vmem:[%s5 + $0x8] sm:$0xf]
  %v35 = vld [vmem:[%s5 + $0xc] sm:$0xf]
  %v36 = vunpack.c.l.bf16 %v32
  %v37 = vunpack.c.l.bf16 %v33
  %v38 = vunpack.c.l.bf16 %v34
  %v39 = vunpack.c.l.bf16 %v35
  %41 = vset.pattern.permute.xlu0 0
  %42 = vperm.xlu0 %41, %v28
  %v43 = vpop.permute.xlu0 %42
  %46 = vset.pattern.permute.xlu0 0
  %47 = vperm.xlu0 %46, %v29
  %v48 = vpop.permute.xlu0 %47
  %51 = vset.pattern.permute.xlu0 0
  %52 = vperm.xlu0 %51, %v30
  %v53 = vpop.permute.xlu0 %52
  %56 = vset.pattern.permute.xlu0 0
  %57 = vperm.xlu0 %56, %v31
  %v58 = vpop.permute.xlu0 %57
  %v60 = vmul.f32 %v24, %v43
  %v61 = vmul.f32 %v25, %v48
  %v62 = vmul.f32 %v26, %v53
  %v63 = vmul.f32 %v27, %v58
  %vm64 = vcmask 64512
  %v65 = vsel %vm64, %v60, -inf
  %66 = vmax.xlane.f32.xlu0 %v65
  %v67 = vpop.xlane.xlu0 %66
  %v68 = vsel %vm64, %v61, -inf
  %69 = vmax.xlane.f32.xlu0 %v68
  %v70 = vpop.xlane.xlu0 %69
  %v71 = vsel %vm64, %v62, -inf
  %72 = vmax.xlane.f32.xlu0 %v71
  %v73 = vpop.xlane.xlu0 %72
  %v74 = vsel %vm64, %v63, -inf
  %75 = vmax.xlane.f32.xlu0 %v74
  %v76 = vpop.xlane.xlu0 %75
  %v77 = vsub.f32 %v60, %v67
  %v78 = vsub.f32 %v61, %v70
  %v79 = vsub.f32 %v62, %v73
  %v80 = vsub.f32 %v63, %v76
  %v81 = vmul.f32 %v77, 1.442695
  %v82 = vpow.pop %v81
  %v83 = vmul.f32 %v78, 1.442695
  %v84 = vpow.pop %v83
  %v85 = vmul.f32 %v79, 1.442695
  %v86 = vpow.pop %v85
  %v87 = vmul.f32 %v80, 1.442695
  %v88 = vpow.pop %v87
  %v89 = vsel %vm64, %v82, 0.0
  %90 = vadd.xlane.f32.xlu0 %v89
  %v91 = vpop.xlane.xlu0 %90
  %v92 = vsel %vm64, %v84, 0.0
  %93 = vadd.xlane.f32.xlu0 %v92
  %v94 = vpop.xlane.xlu0 %93
  %v95 = vsel %vm64, %v86, 0.0
  %96 = vadd.xlane.f32.xlu0 %v95
  %v97 = vpop.xlane.xlu0 %96
  %v98 = vsel %vm64, %v88, 0.0
  %99 = vadd.xlane.f32.xlu0 %v98
  %v100 = vpop.xlane.xlu0 %99
  %v101 = vrcp.pop %v91
  %v102 = vrcp.pop %v94
  %v103 = vrcp.pop %v97
  %v104 = vrcp.pop %v100
  %v105 = vmul.f32 %v82, %v101
  %v106 = vmul.f32 %v84, %v102
  %v107 = vmul.f32 %v86, %v103
  %v108 = vmul.f32 %v88, %v104
  %113 = vrot.lane.b32.xlu0 %v105, 8
  %v114 = vpop.permute.xlu0 %113
  %115 = vrot.lane.b32.xlu0 %v106, 8
  %v116 = vpop.permute.xlu0 %115
  %117 = vrot.lane.b32.xlu0 %v107, 8
  %v118 = vpop.permute.xlu0 %117
  %119 = vrot.lane.b32.xlu0 %v108, 8
  %v120 = vpop.permute.xlu0 %119
  %v125 = vsel %vm64, %v60, %v114
  %v126 = vsel %vm64, %v61, %v116
  %v127 = vsel %vm64, %v62, %v118
  %v128 = vsel %vm64, %v63, %v120
  %v129 = vld [vmem:[%s4 + $0x8] sm:$0x1]
  %131 = vset.pattern.permute.xlu0 64
  %132 = vperm.xlu0 %131, %v36
  %v133 = vpop.permute.xlu0 %132
  %136 = vset.pattern.permute.xlu0 64
  %137 = vperm.xlu0 %136, %v37
  %v138 = vpop.permute.xlu0 %137
  %141 = vset.pattern.permute.xlu0 64
  %142 = vperm.xlu0 %141, %v38
  %v143 = vpop.permute.xlu0 %142
  %146 = vset.pattern.permute.xlu0 64
  %147 = vperm.xlu0 %146, %v39
  %v148 = vpop.permute.xlu0 %147
  %v150 = vmul.f32 %v125, %v133
  %v151 = vmul.f32 %v126, %v138
  %v152 = vmul.f32 %v127, %v143
  %v153 = vmul.f32 %v128, %v148
  %154 = vset.pattern.permute.xlu0 65
  %155 = vperm.xlu0 %154, %v36
  %v156 = vpop.permute.xlu0 %155
  %158 = vset.pattern.permute.xlu0 65
  %159 = vperm.xlu0 %158, %v37
  %v160 = vpop.permute.xlu0 %159
  %162 = vset.pattern.permute.xlu0 65
  %163 = vperm.xlu0 %162, %v38
  %v164 = vpop.permute.xlu0 %163
  %166 = vset.pattern.permute.xlu0 65
  %167 = vperm.xlu0 %166, %v39
  %v168 = vpop.permute.xlu0 %167
  %v170 = vperm.slane %v129, 0
  %v171 = vmul.f32 %v156, %v170
  %v172 = vmul.f32 %v160, %v170
  %v173 = vmul.f32 %v164, %v170
  %v174 = vmul.f32 %v168, %v170
  %v175 = vadd.f32 %v150, %v171
  %v176 = vadd.f32 %v151, %v172
  %v177 = vadd.f32 %v152, %v173
  %v178 = vadd.f32 %v153, %v174
  %179 = vrot.lane.b32.xlu0 %v36, 63
  %v180 = vpop.permute.xlu0 %179
  %181 = vrot.lane.b32.xlu0 %v37, 63
  %v182 = vpop.permute.xlu0 %181
  %183 = vrot.lane.b32.xlu0 %v38, 63
  %v184 = vpop.permute.xlu0 %183
  %185 = vrot.lane.b32.xlu0 %v39, 63
  %v186 = vpop.permute.xlu0 %185
  %v191 = vadd.f32 %v28, %v180
  %v192 = vadd.f32 %v29, %v182
  %v193 = vadd.f32 %v30, %v184
  %v194 = vadd.f32 %v31, %v186
  %v195 = vpack.c.bf16 %v192, %v191
  %v196 = vpack.c.bf16 %v194, %v193
  %v201 = vunpack.c.l.b16 %v32
  %v202 = vunpack.c.l.b16 %v33
  %v203 = vunpack.c.l.b16 %v34
  %v204 = vunpack.c.l.b16 %v35
  %v205 = vpack.c.b16 %v202, %v201
  %v206 = vpack.c.b16 %v204, %v203
  %vm207 = vcmask 261120
  %v209 = vsel %vm207, %v205, 0
  %v212 = vsel %vm207, %v206, 0
  %214 = vmatpush.bf16.msra.mxu0 0
  %215 = vmatpush.bf16.msra.mxu0 0
  %216 = vmatpush.bf16.msra.mxu0 0
  %217 = vmatpush.bf16.msra.mxu0 0
  %218 = vmatpush.bf16.msra.mxu0 0
  %219 = vmatpush.bf16.msra.mxu0 0
  %220 = vmatpush.bf16.msra.mxu0 %v196
  %221 = vmatpush.bf16.msra.mxu0 %v195
  %222 = vmatmul.bf16.gmra.mxu0 %v209
  %v223 = vpop.f32.mrf.mxu0
  %v224 = vadd.f32 0.0, %v223
  %v225 = vpop.f32.mrf.mxu0
  %v226 = vadd.f32 0.0, %v225
  %227 = vmatmul.bf16.gmra.mxu0 %v212
  %v228 = vpop.f32.mrf.mxu0
  %v229 = vadd.f32 0.0, %v228
  %v230 = vpop.f32.mrf.mxu0
  %v231 = vadd.f32 0.0, %v230
  %232 = vdwg.mxu0
  %234 = vset.pattern.permute.xlu0 0
  %235 = vperm.xlu0 %234, %v224
  %v236 = vpop.permute.xlu0 %235
  %239 = vset.pattern.permute.xlu0 0
  %240 = vperm.xlu0 %239, %v226
  %v241 = vpop.permute.xlu0 %240
  %244 = vset.pattern.permute.xlu0 0
  %245 = vperm.xlu0 %244, %v229
  %v246 = vpop.permute.xlu0 %245
  %249 = vset.pattern.permute.xlu0 0
  %250 = vperm.xlu0 %249, %v231
  %v251 = vpop.permute.xlu0 %250
  %v253 = vsub.f32 %v236, %v36
  %v254 = vsub.f32 %v241, %v37
  %v255 = vsub.f32 %v246, %v38
  %v256 = vsub.f32 %v251, %v39
  %v257 = vand.u32 2147483647, %v253
  %v258 = vand.u32 2147483647, %v254
  %v259 = vand.u32 2147483647, %v255
  %v260 = vand.u32 2147483647, %v256
  %vm261 = vcmp.lt.f32.partialorder %v257, 0.5
  %vm262 = vcmp.lt.f32.partialorder %v258, 0.5
  %vm263 = vcmp.lt.f32.partialorder %v259, 0.5
  %vm264 = vcmp.lt.f32.partialorder %v260, 0.5
  %v265 = vsel %vm261, 1, 0
  %v266 = vsel %vm262, 1, 0
  %v267 = vsel %vm263, 1, 0
  %v268 = vsel %vm264, 1, 0
  %v269 = vcvt.s32.f32 %v265
  %v270 = vcvt.s32.f32 %v266
  %v271 = vcvt.s32.f32 %v267
  %v272 = vcvt.s32.f32 %v268
  %v273 = vpack.c.bf16 %v270, %v269
  %v274 = vpack.c.bf16 %v272, %v271
  %v275 = vld [vmem:[%s2] sm:$0xf]
  %v276 = vld [vmem:[%s2 + $0x4] sm:$0x1]
  %279 = vrot.lane.b32.xlu0 %v273, 62
  %v280 = vpop.permute.xlu0 %279
  %281 = vrot.lane.b32.xlu0 %v274, 62
  %v282 = vpop.permute.xlu0 %281
  %v285 = vunpack.c.l.b16 %v275
  %v286 = vunpack.c.l.b16 %v276
  %v287 = vpack.c.b16 %v286, %v285
  %vm288 = vcmask 80896
  %v290 = vsel %vm288, %v280, 0
  %v293 = vsel %vm288, %v282, 0
  %vm295 = vcmask 1044480
  %v297 = vsel %vm295, %v287, 0
  %299 = vmatpush.bf16.msra.mxu0 0
  %300 = vmatpush.bf16.msra.mxu0 0
  %301 = vmatpush.bf16.msra.mxu0 0
  %302 = vmatpush.bf16.msra.mxu0 0
  %303 = vmatpush.bf16.msra.mxu0 0
  %304 = vmatpush.bf16.msra.mxu0 0
  %305 = vmatpush.bf16.msra.mxu0 0
  %306 = vmatpush.bf16.msra.mxu0 %v297
  %307 = vmatmul.bf16.gmra.mxu0 %v290
  %v308 = vpop.f32.mrf.mxu0
  %v309 = vadd.f32 0.0, %v308
  %v310 = vpop.f32.mrf.mxu0
  %v311 = vadd.f32 0.0, %v310
  %312 = vmatmul.bf16.gmra.mxu0 %v293
  %v313 = vpop.f32.mrf.mxu0
  %v314 = vadd.f32 0.0, %v313
  %v315 = vpop.f32.mrf.mxu0
  %v316 = vadd.f32 0.0, %v315
  %317 = vdwg.mxu0
  %v318 = vadd.f32 %v175, %v309
  %v319 = vadd.f32 %v176, %v311
  %v320 = vadd.f32 %v177, %v314
  %v321 = vadd.f32 %v178, %v316
  %v322 = vld [vmem:[%s3] sm:$0xf]
  %v323 = vld [vmem:[%s3 + $0x8] sm:$0xf]
  %v324 = vpack.c.bf16 %v319, %v318
  %v325 = vpack.c.bf16 %v321, %v320
  %v326 = vld [vmem:[%s4] sm:$0x1]
  %v327 = vperm.slane %v326, 0
  %v330 = vunpack.c.l.b16 %v322
  %v331 = vunpack.c.l.b16 %v323
  %v332 = vpack.c.b16 %v331, %v330
  %333 = vrot.lane.b32.xlu0 %v332, 112
  %v334 = vpop.permute.xlu0 %333
  %337 = vrot.lane.b32.xlu0 %v327, 112
  %v338 = vpop.permute.xlu0 %337
  %vm340 = vcmask 130048
  %v342 = vsel %vm340, %v324, 0
  %v345 = vsel %vm340, %v325, 0
  %347 = vmatpush.bf16.msra.mxu0 0
  %348 = vmatpush.bf16.msra.mxu0 0
  %349 = vmatpush.bf16.msra.mxu0 0
  %350 = vmatpush.bf16.msra.mxu0 0
  %351 = vmatpush.bf16.msra.mxu0 0
  %352 = vmatpush.bf16.msra.mxu0 0
  %353 = vmatpush.bf16.msra.mxu0 0
  %354 = vmatpush.bf16.msra.mxu0 %v334
  %355 = vmatmul.bf16.gmra.mxu0 %v342
  %v356 = vpop.f32.mrf.mxu0
  %v357 = vadd.f32 %v338, %v356
  %v358 = vpop.f32.mrf.mxu0
  %v359 = vadd.f32 %v338, %v358
  %360 = vmatmul.bf16.gmra.mxu0 %v345
  %v361 = vpop.f32.mrf.mxu0
  %v362 = vadd.f32 %v338, %v361
  %v363 = vpop.f32.mrf.mxu0
  %v364 = vadd.f32 %v338, %v363
  %365 = vdwg.mxu0
  %v366 = vmul.f32 %v156, %v318
  %v367 = vmul.f32 %v160, %v319
  %v368 = vmul.f32 %v164, %v320
  %v369 = vmul.f32 %v168, %v321
  %v370 = vpack.c.bf16 %v367, %v366
  %v371 = vpack.c.bf16 %v369, %v368
  %v374 = vsel %vm340, %v370, 0
  %v377 = vsel %vm340, %v371, 0
  %379 = vmatpush.bf16.msra.mxu0 0
  %380 = vmatpush.bf16.msra.mxu0 0
  %381 = vmatpush.bf16.msra.mxu0 0
  %382 = vmatpush.bf16.msra.mxu0 0
  %383 = vmatpush.bf16.msra.mxu0 0
  %384 = vmatpush.bf16.msra.mxu0 0
  %385 = vmatpush.bf16.msra.mxu0 0
  %386 = vmatpush.bf16.msra.mxu0 %v332
  %387 = vmatmul.bf16.gmra.mxu0 %v374
  %v388 = vpop.f32.mrf.mxu0
  %v389 = vadd.f32 0.0, %v388
  %v390 = vpop.f32.mrf.mxu0
  %v391 = vadd.f32 0.0, %v390
  %392 = vmatmul.bf16.gmra.mxu0 %v377
  %v393 = vpop.f32.mrf.mxu0
  %v394 = vadd.f32 0.0, %v393
  %v395 = vpop.f32.mrf.mxu0
  %v396 = vadd.f32 0.0, %v395
  %397 = vdwg.mxu0
  %v398 = vpack.c.bf16 %v391, %v389
  %v399 = vpack.c.bf16 %v396, %v394
  %400 = vrot.lane.b32.xlu0 %v205, 96
  %v401 = vpop.permute.xlu0 %400
  %402 = vrot.lane.b32.xlu0 %v206, 96
  %v403 = vpop.permute.xlu0 %402
  %v405 = vsel %vm207, %v401, 0
  %v408 = vsel %vm207, %v403, 0
  %410 = vmatpush.bf16.msra.mxu0 0
  %411 = vmatpush.bf16.msra.mxu0 0
  %412 = vmatpush.bf16.msra.mxu0 0
  %413 = vmatpush.bf16.msra.mxu0 0
  %414 = vmatpush.bf16.msra.mxu0 0
  %415 = vmatpush.bf16.msra.mxu0 0
  %416 = vmatpush.bf16.msra.mxu0 %v399
  %417 = vmatpush.bf16.msra.mxu0 %v398
  %418 = vmatmul.bf16.gmra.mxu0 %v405
  %v419 = vpop.f32.mrf.mxu0
  %v420 = vadd.f32 %v327, %v419
  %v421 = vpop.f32.mrf.mxu0
  %v422 = vadd.f32 %v327, %v421
  %423 = vmatmul.bf16.gmra.mxu0 %v408
  %v424 = vpop.f32.mrf.mxu0
  %v425 = vadd.f32 %v327, %v424
  %v426 = vpop.f32.mrf.mxu0
  %v427 = vadd.f32 %v327, %v426
  %428 = vdwg.mxu0
  %v429 = vld [vmem:[%s3 + $0x4] sm:$0x3]
  %v430 = vmul.f32 %v357, %v420
  %v431 = vmul.f32 %v359, %v422
  %v432 = vmul.f32 %v362, %v425
  %v433 = vmul.f32 %v364, %v427
  %v434 = vpack.c.bf16 %v431, %v430
  %v435 = vpack.c.bf16 %v433, %v432
  %436 = vrot.lane.b32.xlu0 %v332, 16
  %v437 = vpop.permute.xlu0 %436
  %v440 = vsel %vm340, %v434, 0
  %v443 = vsel %vm340, %v435, 0
  %445 = vmatpush.bf16.msra.mxu0 0
  %446 = vmatpush.bf16.msra.mxu0 0
  %447 = vmatpush.bf16.msra.mxu0 0
  %448 = vmatpush.bf16.msra.mxu0 0
  %449 = vmatpush.bf16.msra.mxu0 0
  %450 = vmatpush.bf16.msra.mxu0 0
  %451 = vmatpush.bf16.msra.mxu0 0
  %452 = vmatpush.bf16.msra.mxu0 %v437
  %453 = vmatmul.bf16.gmra.mxu0 %v440
  %v454 = vpop.f32.mrf.mxu0
  %v455 = vadd.f32 0.0, %v454
  %v456 = vpop.f32.mrf.mxu0
  %v457 = vadd.f32 0.0, %v456
  %458 = vmatmul.bf16.gmra.mxu0 %v443
  %v459 = vpop.f32.mrf.mxu0
  %v460 = vadd.f32 0.0, %v459
  %v461 = vpop.f32.mrf.mxu0
  %v462 = vadd.f32 0.0, %v461
  %463 = vdwg.mxu0
  %v464 = vmul.f32 %v455, 0.5
  %v465 = vmul.f32 %v457, 0.5
  %v466 = vmul.f32 %v460, 0.5
  %v467 = vmul.f32 %v462, 0.5
  %v468 = vsub.f32 1.0, %v191
  %v469 = vsub.f32 1.0, %v192
  %v470 = vsub.f32 1.0, %v193
  %v471 = vsub.f32 1.0, %v194
  %v472 = vmul.f32 %v468, -1e+09
  %v473 = vmul.f32 %v469, -1e+09
  %v474 = vmul.f32 %v470, -1e+09
  %v475 = vmul.f32 %v471, -1e+09
  %477 = vset.pattern.permute.xlu0 0
  %478 = vperm.xlu0 %477, %v472
  %v479 = vpop.permute.xlu0 %478
  %482 = vset.pattern.permute.xlu0 0
  %483 = vperm.xlu0 %482, %v473
  %v484 = vpop.permute.xlu0 %483
  %487 = vset.pattern.permute.xlu0 0
  %488 = vperm.xlu0 %487, %v474
  %v489 = vpop.permute.xlu0 %488
  %492 = vset.pattern.permute.xlu0 0
  %493 = vperm.xlu0 %492, %v475
  %v494 = vpop.permute.xlu0 %493
  %v496 = vadd.f32 %v464, %v479
  %v497 = vadd.f32 %v465, %v484
  %v498 = vadd.f32 %v466, %v489
  %v499 = vadd.f32 %v467, %v494
  %v500 = vmul.f32 %v496, 1.442695
  %v501 = vpow.pop %v500
  %v502 = vmul.f32 %v497, 1.442695
  %v503 = vpow.pop %v502
  %v504 = vmul.f32 %v498, 1.442695
  %v505 = vpow.pop %v504
  %v506 = vmul.f32 %v499, 1.442695
  %v507 = vpow.pop %v506
  %v508 = vpack.c.bf16 %v503, %v501
  %v509 = vpack.c.bf16 %v507, %v505
  %510 = vmatpush.bf16.msra.mxu0 0
  %511 = vmatpush.bf16.msra.mxu0 0
  %512 = vmatpush.bf16.msra.mxu0 0
  %513 = vmatpush.bf16.msra.mxu0 0
  %514 = vmatpush.bf16.msra.mxu0 0
  %515 = vmatpush.bf16.msra.mxu0 0
  %516 = vmatpush.bf16.msra.mxu0 %v509
  %517 = vmatpush.bf16.msra.mxu0 %v508
  %518 = vmatmul.bf16.gmra.mxu0 %v405
  %v519 = vpop.f32.mrf.mxu0
  %v520 = vadd.f32 0.0, %v519
  %v521 = vpop.f32.mrf.mxu0
  %v522 = vadd.f32 0.0, %v521
  %523 = vmatmul.bf16.gmra.mxu0 %v408
  %v524 = vpop.f32.mrf.mxu0
  %v525 = vadd.f32 0.0, %v524
  %v526 = vpop.f32.mrf.mxu0
  %v527 = vadd.f32 0.0, %v526
  %528 = vdwg.mxu0
  %v529 = vrcp.pop %v520
  %v530 = vrcp.pop %v522
  %v531 = vrcp.pop %v525
  %v532 = vrcp.pop %v527
  %v533 = vmul.f32 %v501, %v529
  %v534 = vmul.f32 %v503, %v530
  %v535 = vmul.f32 %v505, %v531
  %v536 = vmul.f32 %v507, %v532
  %v537 = vpack.c.bf16 %v534, %v533
  %v538 = vpack.c.bf16 %v536, %v535
  %v540 = vunpack.c.l.b16 %v429
  %v541 = vpack.c.b16 %v540, %v540
  %542 = vrot.lane.b32.xlu0 %v541, 92
  %v543 = vpop.permute.xlu0 %542
  %vm544 = vcmask 31744
  %v546 = vsel %vm544, %v537, 0
  %v549 = vsel %vm544, %v538, 0
  %vm551 = vcmask 1041408
  %v553 = vsel %vm551, %v543, 0
  %555 = vmatpush.bf16.msra.mxu0 0
  %556 = vmatpush.bf16.msra.mxu0 0
  %557 = vmatpush.bf16.msra.mxu0 0
  %558 = vmatpush.bf16.msra.mxu0 0
  %559 = vmatpush.bf16.msra.mxu0 0
  %560 = vmatpush.bf16.msra.mxu0 0
  %561 = vmatpush.bf16.msra.mxu0 0
  %562 = vmatpush.bf16.msra.mxu0 %v553
  %563 = vmatmul.bf16.gmra.mxu0 %v546
  %v564 = vpop.f32.mrf.mxu0
  %v565 = vadd.f32 0.0, %v564
  %v566 = vpop.f32.mrf.mxu0
  %v567 = vadd.f32 0.0, %v566
  %568 = vmatmul.bf16.gmra.mxu0 %v549
  %v569 = vpop.f32.mrf.mxu0
  %v570 = vadd.f32 0.0, %v569
  %v571 = vpop.f32.mrf.mxu0
  %v572 = vadd.f32 0.0, %v571
  %573 = vdwg.mxu0
  %578 = vrot.lane.b32.xlu0 %v357, 112
  %v579 = vpop.permute.xlu0 %578
  %580 = vrot.lane.b32.xlu0 %v359, 112
  %v581 = vpop.permute.xlu0 %580
  %582 = vrot.lane.b32.xlu0 %v362, 112
  %v583 = vpop.permute.xlu0 %582
  %584 = vrot.lane.b32.xlu0 %v364, 112
  %v585 = vpop.permute.xlu0 %584
  %v590 = vmul.f32 %v565, %v579
  %v591 = vmul.f32 %v567, %v581
  %v592 = vmul.f32 %v570, %v583
  %v593 = vmul.f32 %v572, %v585
  %v594 = vpack.c.bf16 %v591, %v590
  %v595 = vpack.c.bf16 %v593, %v592
  %596 = vmatpush.bf16.msra.mxu0 0
  %597 = vmatpush.bf16.msra.mxu0 0
  %598 = vmatpush.bf16.msra.mxu0 0
  %599 = vmatpush.bf16.msra.mxu0 0
  %600 = vmatpush.bf16.msra.mxu0 0
  %601 = vmatpush.bf16.msra.mxu0 0
  %602 = vmatpush.bf16.msra.mxu0 %v595
  %603 = vmatpush.bf16.msra.mxu0 %v594
  %604 = vmatmul.bf16.gmra.mxu0 %v405
  %v605 = vpop.f32.mrf.mxu0
  %v606 = vadd.f32 0.0, %v605
  %v607 = vpop.f32.mrf.mxu0
  %v608 = vadd.f32 0.0, %v607
  %609 = vmatmul.bf16.gmra.mxu0 %v408
  %v610 = vpop.f32.mrf.mxu0
  %v611 = vadd.f32 0.0, %v610
  %v612 = vpop.f32.mrf.mxu0
  %v613 = vadd.f32 0.0, %v612
  %614 = vdwg.mxu0
  %v615 = vpack.c.bf16 %v608, %v606
  %v616 = vpack.c.bf16 %v613, %v611
  %v617 = vld [vmem:[%s4 + $0x1] sm:$0x1]
  %v618 = vperm.slane %v617, 0
  %619 = vrot.lane.b32.xlu0 %v332, 80
  %v620 = vpop.permute.xlu0 %619
  %v623 = vsel %vm340, %v615, 0
  %v626 = vsel %vm340, %v616, 0
  %628 = vmatpush.bf16.msra.mxu0 0
  %629 = vmatpush.bf16.msra.mxu0 0
  %630 = vmatpush.bf16.msra.mxu0 0
  %631 = vmatpush.bf16.msra.mxu0 0
  %632 = vmatpush.bf16.msra.mxu0 0
  %633 = vmatpush.bf16.msra.mxu0 0
  %634 = vmatpush.bf16.msra.mxu0 0
  %635 = vmatpush.bf16.msra.mxu0 %v620
  %636 = vmatmul.bf16.gmra.mxu0 %v623
  %v637 = vpop.f32.mrf.mxu0
  %v638 = vadd.f32 %v618, %v637
  %v639 = vpop.f32.mrf.mxu0
  %v640 = vadd.f32 %v618, %v639
  %641 = vmatmul.bf16.gmra.mxu0 %v626
  %v642 = vpop.f32.mrf.mxu0
  %v643 = vadd.f32 %v618, %v642
  %v644 = vpop.f32.mrf.mxu0
  %v645 = vadd.f32 %v618, %v644
  %646 = vdwg.mxu0
  %v647 = vadd.f32 %v318, %v638
  %v648 = vadd.f32 %v319, %v640
  %v649 = vadd.f32 %v320, %v643
  %v650 = vadd.f32 %v321, %v645
  %v651 = vld [vmem:[%s4 + $0x2] sm:$0x1]
  %v652 = vld [vmem:[%s4 + $0x3] sm:$0x1]
  %v653 = vsel %vm340, %v647, 0.0
  %654 = vadd.xlane.f32.xlu0 %v653
  %v655 = vpop.xlane.xlu0 %654
  %v656 = vsel %vm340, %v648, 0.0
  %657 = vadd.xlane.f32.xlu0 %v656
  %v658 = vpop.xlane.xlu0 %657
  %v659 = vsel %vm340, %v649, 0.0
  %660 = vadd.xlane.f32.xlu0 %v659
  %v661 = vpop.xlane.xlu0 %660
  %v662 = vsel %vm340, %v650, 0.0
  %663 = vadd.xlane.f32.xlu0 %v662
  %v664 = vpop.xlane.xlu0 %663
  %v665 = vrcp.pop 16.0
  %v666 = vmul.f32 16.0, %v665
  %v667 = vsub.f32 1.0, %v666
  %v668 = vmul.f32 %v665, %v667
  %v669 = vadd.f32 %v665, %v668
  %vm670 = vweird.f32 %v665
  %v671 = vsel %vm670, %v665, %v669
  %v672 = vmul.f32 %v655, %v671
  %v673 = vmul.f32 %v658, %v671
  %v674 = vmul.f32 %v661, %v671
  %v675 = vmul.f32 %v664, %v671
  %v676 = vsub.f32 %v647, %v672
  %v677 = vsub.f32 %v648, %v673
  %v678 = vsub.f32 %v649, %v674
  %v679 = vsub.f32 %v650, %v675
  %v680 = vmul.f32 %v676, %v676
  %v681 = vmul.f32 %v677, %v677
  %v682 = vmul.f32 %v678, %v678
  %v683 = vmul.f32 %v679, %v679
  %v684 = vsel %vm340, %v680, 0.0
  %685 = vadd.xlane.f32.xlu0 %v684
  %v686 = vpop.xlane.xlu0 %685
  %v687 = vsel %vm340, %v681, 0.0
  %688 = vadd.xlane.f32.xlu0 %v687
  %v689 = vpop.xlane.xlu0 %688
  %v690 = vsel %vm340, %v682, 0.0
  %691 = vadd.xlane.f32.xlu0 %v690
  %v692 = vpop.xlane.xlu0 %691
  %v693 = vsel %vm340, %v683, 0.0
  %694 = vadd.xlane.f32.xlu0 %v693
  %v695 = vpop.xlane.xlu0 %694
  %v696 = vmul.f32 %v686, %v671
  %v697 = vmul.f32 %v689, %v671
  %v698 = vmul.f32 %v692, %v671
  %v699 = vmul.f32 %v695, %v671
  %v700 = vadd.f32 %v696, 1e-05
  %v701 = vadd.f32 %v697, 1e-05
  %v702 = vadd.f32 %v698, 1e-05
  %v703 = vadd.f32 %v699, 1e-05
  %v704 = vrsqrt.pop %v700
  %v705 = vmul.f32 %v704, %v700
  %v706 = vmul.f32 %v705, %v704
  %v707 = vmul.f32 0.5, %v706
  %v708 = vsub.f32 1.5, %v707
  %v709 = vmul.f32 %v704, %v708
  %vm710 = vweird.f32 %v700
  %vm711 = vweird.f32 %v704
  %vm712 = vmor %vm710, %vm711
  %v713 = vsel %vm712, %v704, %v709
  %v714 = vrsqrt.pop %v701
  %v715 = vmul.f32 %v714, %v701
  %v716 = vmul.f32 %v715, %v714
  %v717 = vmul.f32 0.5, %v716
  %v718 = vsub.f32 1.5, %v717
  %v719 = vmul.f32 %v714, %v718
  %vm720 = vweird.f32 %v701
  %vm721 = vweird.f32 %v714
  %vm722 = vmor %vm720, %vm721
  %v723 = vsel %vm722, %v714, %v719
  %v724 = vrsqrt.pop %v702
  %v725 = vmul.f32 %v724, %v702
  %v726 = vmul.f32 %v725, %v724
  %v727 = vmul.f32 0.5, %v726
  %v728 = vsub.f32 1.5, %v727
  %v729 = vmul.f32 %v724, %v728
  %vm730 = vweird.f32 %v702
  %vm731 = vweird.f32 %v724
  %vm732 = vmor %vm730, %vm731
  %v733 = vsel %vm732, %v724, %v729
  %v734 = vrsqrt.pop %v703
  %v735 = vmul.f32 %v734, %v703
  %v736 = vmul.f32 %v735, %v734
  %v737 = vmul.f32 0.5, %v736
  %v738 = vsub.f32 1.5, %v737
  %v739 = vmul.f32 %v734, %v738
  %vm740 = vweird.f32 %v703
  %vm741 = vweird.f32 %v734
  %vm742 = vmor %vm740, %vm741
  %v743 = vsel %vm742, %v734, %v739
  %v744 = vmul.f32 %v676, %v713
  %v745 = vmul.f32 %v677, %v723
  %v746 = vmul.f32 %v678, %v733
  %v747 = vmul.f32 %v679, %v743
  %v748 = vperm.slane %v651, 0
  %v749 = vmul.f32 %v744, %v748
  %v750 = vmul.f32 %v745, %v748
  %v751 = vmul.f32 %v746, %v748
  %v752 = vmul.f32 %v747, %v748
  %v753 = vperm.slane %v652, 0
  %v754 = vadd.f32 %v749, %v753
  %v755 = vadd.f32 %v750, %v753
  %v756 = vadd.f32 %v751, %v753
  %v757 = vadd.f32 %v752, %v753
  %v758 = vpack.c.bf16 %v755, %v754
  %v759 = vpack.c.bf16 %v757, %v756
  %v760 = vld [vmem:[%s4 + $0x4] sm:$0x1]
  %v761 = vperm.slane %v760, 0
  %762 = vrot.lane.b32.xlu0 %v332, 64
  %v763 = vpop.permute.xlu0 %762
  %v766 = vsel %vm340, %v758, 0
  %v769 = vsel %vm340, %v759, 0
  %771 = vmatpush.bf16.msra.mxu0 0
  %772 = vmatpush.bf16.msra.mxu0 0
  %773 = vmatpush.bf16.msra.mxu0 0
  %774 = vmatpush.bf16.msra.mxu0 0
  %775 = vmatpush.bf16.msra.mxu0 0
  %776 = vmatpush.bf16.msra.mxu0 0
  %777 = vmatpush.bf16.msra.mxu0 0
  %778 = vmatpush.bf16.msra.mxu0 %v763
  %779 = vmatmul.bf16.gmra.mxu0 %v766
  %v780 = vpop.f32.mrf.mxu0
  %v781 = vadd.f32 %v761, %v780
  %v782 = vpop.f32.mrf.mxu0
  %v783 = vadd.f32 %v761, %v782
  %784 = vmatmul.bf16.gmra.mxu0 %v769
  %v785 = vpop.f32.mrf.mxu0
  %v786 = vadd.f32 %v761, %v785
  %v787 = vpop.f32.mrf.mxu0
  %v788 = vadd.f32 %v761, %v787
  %789 = vdwg.mxu0
  %v790 = vmax.f32 %v781, 0.0
  %v791 = vmax.f32 %v783, 0.0
  %v792 = vmax.f32 %v786, 0.0
  %v793 = vmax.f32 %v788, 0.0
  %v794 = vld [vmem:[%s3] sm:$0xf]
  %v795 = vld [vmem:[%s3 + $0x8] sm:$0xf]
  %v796 = vld [vmem:[%s3 + $0x10] sm:$0xf]
  %v797 = vld [vmem:[%s3 + $0x18] sm:$0xf]
  %v798 = vpack.c.bf16 %v791, %v790
  %v799 = vpack.c.bf16 %v793, %v792
  %v800 = vld [vmem:[%s4 + $0x5] sm:$0x1]
  %v801 = vperm.slane %v800, 0
  %v806 = vunpack.c.l.b16 %v794
  %v807 = vunpack.c.l.b16 %v795
  %v808 = vunpack.c.l.b16 %v796
  %v809 = vunpack.c.l.b16 %v797
  %v810 = vpack.c.b16 %v807, %v806
  %v811 = vpack.c.b16 %v809, %v808
  %812 = vrot.lane.b32.xlu0 %v810, 32
  %v813 = vpop.permute.xlu0 %812
  %814 = vrot.lane.b32.xlu0 %v811, 32
  %v815 = vpop.permute.xlu0 %814
  %v819 = vsel %vm207, %v798, 0
  %v822 = vsel %vm207, %v799, 0
  %824 = vmatpush.bf16.msra.mxu0 0
  %825 = vmatpush.bf16.msra.mxu0 0
  %826 = vmatpush.bf16.msra.mxu0 0
  %827 = vmatpush.bf16.msra.mxu0 0
  %828 = vmatpush.bf16.msra.mxu0 0
  %829 = vmatpush.bf16.msra.mxu0 0
  %830 = vmatpush.bf16.msra.mxu0 %v815
  %831 = vmatpush.bf16.msra.mxu0 %v813
  %832 = vmatmul.bf16.gmra.mxu0 %v819
  %v833 = vpop.f32.mrf.mxu0
  %v834 = vadd.f32 %v801, %v833
  %v835 = vpop.f32.mrf.mxu0
  %v836 = vadd.f32 %v801, %v835
  %837 = vmatmul.bf16.gmra.mxu0 %v822
  %v838 = vpop.f32.mrf.mxu0
  %v839 = vadd.f32 %v801, %v838
  %v840 = vpop.f32.mrf.mxu0
  %v841 = vadd.f32 %v801, %v840
  %842 = vdwg.mxu0
  %v843 = vadd.f32 %v754, %v834
  %v844 = vadd.f32 %v755, %v836
  %v845 = vadd.f32 %v756, %v839
  %v846 = vadd.f32 %v757, %v841
  %v847 = vsel %vm340, %v843, 0.0
  %848 = vadd.xlane.f32.xlu0 %v847
  %v849 = vpop.xlane.xlu0 %848
  %v850 = vsel %vm340, %v844, 0.0
  %851 = vadd.xlane.f32.xlu0 %v850
  %v852 = vpop.xlane.xlu0 %851
  %v853 = vsel %vm340, %v845, 0.0
  %854 = vadd.xlane.f32.xlu0 %v853
  %v855 = vpop.xlane.xlu0 %854
  %v856 = vsel %vm340, %v846, 0.0
  %857 = vadd.xlane.f32.xlu0 %v856
  %v858 = vpop.xlane.xlu0 %857
  %v859 = vmul.f32 %v849, %v671
  %v860 = vmul.f32 %v852, %v671
  %v861 = vmul.f32 %v855, %v671
  %v862 = vmul.f32 %v858, %v671
  %v863 = vsub.f32 %v843, %v859
  %v864 = vsub.f32 %v844, %v860
  %v865 = vsub.f32 %v845, %v861
  %v866 = vsub.f32 %v846, %v862
  %v867 = vmul.f32 %v863, %v863
  %v868 = vmul.f32 %v864, %v864
  %v869 = vmul.f32 %v865, %v865
  %v870 = vmul.f32 %v866, %v866
  %v871 = vsel %vm340, %v867, 0.0
  %872 = vadd.xlane.f32.xlu0 %v871
  %v873 = vpop.xlane.xlu0 %872
  %v874 = vsel %vm340, %v868, 0.0
  %875 = vadd.xlane.f32.xlu0 %v874
  %v876 = vpop.xlane.xlu0 %875
  %v877 = vsel %vm340, %v869, 0.0
  %878 = vadd.xlane.f32.xlu0 %v877
  %v879 = vpop.xlane.xlu0 %878
  %v880 = vsel %vm340, %v870, 0.0
  %881 = vadd.xlane.f32.xlu0 %v880
  %v882 = vpop.xlane.xlu0 %881
  %v883 = vmul.f32 %v873, %v671
  %v884 = vmul.f32 %v876, %v671
  %v885 = vmul.f32 %v879, %v671
  %v886 = vmul.f32 %v882, %v671
  %v887 = vadd.f32 %v883, 1e-05
  %v888 = vadd.f32 %v884, 1e-05
  %v889 = vadd.f32 %v885, 1e-05
  %v890 = vadd.f32 %v886, 1e-05
  %v891 = vrsqrt.pop %v887
  %v892 = vmul.f32 %v891, %v887
  %v893 = vmul.f32 %v892, %v891
  %v894 = vmul.f32 0.5, %v893
  %v895 = vsub.f32 1.5, %v894
  %v896 = vmul.f32 %v891, %v895
  %vm897 = vweird.f32 %v887
  %vm898 = vweird.f32 %v891
  %vm899 = vmor %vm897, %vm898
  %v900 = vsel %vm899, %v891, %v896
  %v901 = vrsqrt.pop %v888
  %v902 = vmul.f32 %v901, %v888
  %v903 = vmul.f32 %v902, %v901
  %v904 = vmul.f32 0.5, %v903
  %v905 = vsub.f32 1.5, %v904
  %v906 = vmul.f32 %v901, %v905
  %vm907 = vweird.f32 %v888
  %vm908 = vweird.f32 %v901
  %vm909 = vmor %vm907, %vm908
  %v910 = vsel %vm909, %v901, %v906
  %v911 = vrsqrt.pop %v889
  %v912 = vmul.f32 %v911, %v889
  %v913 = vmul.f32 %v912, %v911
  %v914 = vmul.f32 0.5, %v913
  %v915 = vsub.f32 1.5, %v914
  %v916 = vmul.f32 %v911, %v915
  %vm917 = vweird.f32 %v889
  %vm918 = vweird.f32 %v911
  %vm919 = vmor %vm917, %vm918
  %v920 = vsel %vm919, %v911, %v916
  %v921 = vrsqrt.pop %v890
  %v922 = vmul.f32 %v921, %v890
  %v923 = vmul.f32 %v922, %v921
  %v924 = vmul.f32 0.5, %v923
  %v925 = vsub.f32 1.5, %v924
  %v926 = vmul.f32 %v921, %v925
  %vm927 = vweird.f32 %v890
  %vm928 = vweird.f32 %v921
  %vm929 = vmor %vm927, %vm928
  %v930 = vsel %vm929, %v921, %v926
  %v931 = vmul.f32 %v863, %v900
  %v932 = vmul.f32 %v864, %v910
  %v933 = vmul.f32 %v865, %v920
  %v934 = vmul.f32 %v866, %v930
  %v935 = vld [vmem:[%s3 + $0x4] sm:$0xf]
  %v936 = vld [vmem:[%s3 + $0xc] sm:$0xf]
  %v937 = vpack.c.bf16 %v932, %v931
  %v938 = vpack.c.bf16 %v934, %v933
  %v939 = vld [vmem:[%s4 + $0x6] sm:$0x1]
  %v940 = vperm.slane %v939, 0
  %v943 = vunpack.c.l.b16 %v935
  %v944 = vunpack.c.l.b16 %v936
  %v945 = vpack.c.b16 %v944, %v943
  %v948 = vsel %vm340, %v937, 0
  %v951 = vsel %vm340, %v938, 0
  %953 = vmatpush.bf16.msra.mxu0 0
  %954 = vmatpush.bf16.msra.mxu0 0
  %955 = vmatpush.bf16.msra.mxu0 0
  %956 = vmatpush.bf16.msra.mxu0 0
  %957 = vmatpush.bf16.msra.mxu0 0
  %958 = vmatpush.bf16.msra.mxu0 0
  %959 = vmatpush.bf16.msra.mxu0 0
  %960 = vmatpush.bf16.msra.mxu0 %v945
  %961 = vmatmul.bf16.gmra.mxu0 %v948
  %v962 = vpop.f32.mrf.mxu0
  %v963 = vadd.f32 %v940, %v962
  %v964 = vpop.f32.mrf.mxu0
  %v965 = vadd.f32 %v940, %v964
  %966 = vmatmul.bf16.gmra.mxu0 %v951
  %v967 = vpop.f32.mrf.mxu0
  %v968 = vadd.f32 %v940, %v967
  %v969 = vpop.f32.mrf.mxu0
  %v970 = vadd.f32 %v940, %v969
  %971 = vdwg.mxu0
  %v972 = vtanh.pop %v963
  %v973 = vtanh.pop %v965
  %v974 = vtanh.pop %v968
  %v975 = vtanh.pop %v970
  %v976 = vld [vmem:[%s3 + $0x4] sm:$0xf]
  %v977 = vld [vmem:[%s3 + $0xc] sm:$0xf]
  %v978 = vld [vmem:[%s3 + $0x14] sm:$0xf]
  %v979 = vld [vmem:[%s3 + $0x1c] sm:$0xf]
  %v980 = vpack.c.bf16 %v973, %v972
  %v981 = vpack.c.bf16 %v975, %v974
  %v982 = vld [vmem:[%s4 + $0x7] sm:$0x1]
  %v983 = vperm.slane %v982, 0
  %v988 = vunpack.c.l.b16 %v976
  %v989 = vunpack.c.l.b16 %v977
  %v990 = vunpack.c.l.b16 %v978
  %v991 = vunpack.c.l.b16 %v979
  %v992 = vpack.c.b16 %v989, %v988
  %v993 = vpack.c.b16 %v991, %v990
  %994 = vrot.lane.b32.xlu0 %v992, 96
  %v995 = vpop.permute.xlu0 %994
  %996 = vrot.lane.b32.xlu0 %v993, 96
  %v997 = vpop.permute.xlu0 %996
  %v1001 = vsel %vm207, %v980, 0
  %v1004 = vsel %vm207, %v981, 0
  %1006 = vmatpush.bf16.msra.mxu0 0
  %1007 = vmatpush.bf16.msra.mxu0 0
  %1008 = vmatpush.bf16.msra.mxu0 0
  %1009 = vmatpush.bf16.msra.mxu0 0
  %1010 = vmatpush.bf16.msra.mxu0 0
  %1011 = vmatpush.bf16.msra.mxu0 0
  %1012 = vmatpush.bf16.msra.mxu0 %v997
  %1013 = vmatpush.bf16.msra.mxu0 %v995
  %1014 = vmatmul.bf16.gmra.mxu0 %v1001
  %v1015 = vpop.f32.mrf.mxu0
  %v1016 = vadd.f32 %v983, %v1015
  %v1017 = vpop.f32.mrf.mxu0
  %v1018 = vadd.f32 %v983, %v1017
  %1019 = vmatmul.bf16.gmra.mxu0 %v1004
  %v1020 = vpop.f32.mrf.mxu0
  %v1021 = vadd.f32 %v983, %v1020
  %v1022 = vpop.f32.mrf.mxu0
  %v1023 = vadd.f32 %v983, %v1022
  %1024 = vdwg.mxu0
  %vm1025 = vcmask 23552
  %1026 = vst.msk [vmem:[%s6] sm:$0xff] %vm1025, %v1016
  %1027 = vst.msk [vmem:[%s6 + $0x8] sm:$0xff] %vm1025, %v1018
  %1028 = vst.msk [vmem:[%s6 + $0x10] sm:$0xff] %vm1025, %v1021
  %1029 = vst.msk [vmem:[%s6 + $0x18] sm:$0xff] %vm1025, %v1023
  // Predicated region
  $region26: #{transformer_predictor.1} parent=0 // pred_check
    _
  $region27: #{transformer_predictor.1} parent=0 // pred_check_branch
    %1031 = sbr.rel (0) target = $region29
  $region28: #{transformer_predictor.1} parent=0 // pred_region
    _
  $region29: #{transformer_predictor.1} parent=0 // pred_fallthru
    _
  // Predicated region
  $region30: #{transformer_predictor.1} parent=0 // pred_check
    _
  $region31: #{transformer_predictor.1} parent=0 // pred_check_branch
    %1033 = sbr.rel (0) target = $region33
  $region32: #{transformer_predictor.1} parent=0 // pred_region
    _
  $region33: #{transformer_predictor.1} parent=0 // pred_fallthru
    _

</llo_original>
